<compile_context>
chip_gen: v5e
topology: v5e:2x2
jax: 0.10.0
libtpu: 0.0.40
codegen_flags: <defaults>
</compile_context>

<pallas_src>
import jax
import jax.numpy as jnp
from jax.experimental import pallas as pl
from jax.experimental.pallas import tpu as pltpu


def _linear_kernel(x_ref, w_ref, b_ref, o_ref):
    # x_ref: (TB, F) VMEM, w_ref: (F, 1) VMEM (resident), b_ref: (1,) SMEM, o_ref: (TB, 1) VMEM
    acc = jnp.dot(x_ref[...], w_ref[...], preferred_element_type=jnp.float32)
    o_ref[...] = (acc + b_ref[0]).astype(o_ref.dtype)


def _round_up(n, m):
    return ((n + m - 1) // m) * m


# Target ~4 MiB per x input buffer; with double buffering that is 8 MiB of x staging,
# comfortably under the scoped-VMEM defaults of every TPU generation (v5e 16 MiB,
# v6e/v7x 32 MiB) and far below v7x's 64 MiB physical VMEM.
_TARGET_BLOCK_BYTES = 4 * 1024 * 1024
_MAX_BLOCK_ROWS = 8192


def _pick_batch_tile(batch, in_features, itemsize):
    rows = _TARGET_BLOCK_BYTES // max(1, in_features * itemsize)
    rows = max(8, min(rows, _MAX_BLOCK_ROWS))
    rows = (rows // 8) * 8                      # sublane multiple
    return min(rows, _round_up(batch, 8))       # no point tiling beyond the (padded) batch


def linear_regression_forward(x, weight, bias):
    """y = x @ weight.T + bias  (matches nn.Linear(in_features, 1)).

    x:      (batch, in_features) float32
    weight: (1, in_features)     float32
    bias:   (1,)                 float32
    returns (batch, 1)           float32
    """
    batch, in_features = x.shape
    itemsize = jnp.dtype(x.dtype).itemsize

    tb = _pick_batch_tile(batch, in_features, itemsize)
    batch_p = _round_up(batch, tb)
    if batch_p != batch:
        x = jnp.pad(x, ((0, batch_p - batch), (0, 0)))

    w_t = weight.T                              # (in_features, 1) so the hot path is one MXU matmul
    b1d = bias.reshape((1,)).astype(x.dtype)    # scalar on the SMEM/scalar path

    grid = (batch_p // tb,)

    y_padded = pl.pallas_call(
        _linear_kernel,
        out_shape=jax.ShapeDtypeStruct((batch_p, 1), x.dtype),
        grid=grid,
        in_specs=[
            # x: tiled over the batch axis -> auto double-buffered DMA pipeline.
            pl.BlockSpec((tb, in_features), lambda i: (i, 0)),
            # weight: constant block index -> stays resident in VMEM across iterations.
            pl.BlockSpec((in_features, 1), lambda i: (0, 0)),
            # bias: single scalar in SMEM.
            pl.BlockSpec(memory_space=pltpu.MemorySpace.SMEM),
        ],
        out_specs=pl.BlockSpec((tb, 1), lambda i: (i, 0)),
        compiler_params=pltpu.CompilerParams(
            dimension_semantics=("parallel",),   # shards the batch axis across v7x's 2 TCs
        ),
    )(x, w_t, b1d)

    return y_padded[:batch]


# L1/L2 regularization from the module are scalar parameter reductions (not part of
# forward); implemented in plain JAX since they are not a kernel hot path.
def l1_regularization(m, weight, bias):
    return m * jnp.sum(jnp.abs(weight)) + m * jnp.sum(jnp.abs(bias))


def l2_regularization(p, weight, bias):
    return p * jnp.sum(weight ** 2) + p * jnp.sum(bias ** 2)


if __name__ == "__main__":
    key = jax.random.PRNGKey(0)
    k_x, k_w, k_b, k_x2 = jax.random.split(key, 4)

    batch, in_features = 8, 32

    x = jax.random.normal(k_x, (batch, in_features), dtype=jnp.float32)
    # Deterministic init mimicking nn.Linear's uniform(-1/sqrt(fan_in), 1/sqrt(fan_in))
    bound = 1.0 / jnp.sqrt(jnp.float32(in_features))
    weight = jax.random.uniform(k_w, (1, in_features), jnp.float32, -bound, bound)
    bias = jax.random.uniform(k_b, (1,), jnp.float32, -bound, bound)

    y = linear_regression_forward(x, weight, bias)
    jax.block_until_ready(y)
    y_ref = x @ weight.T + bias
    assert y.shape == (batch, 1)
    assert jnp.allclose(y, y_ref, atol=1e-5, rtol=1e-5)

    # Second check: batch not a multiple of the tile -> exercises padding + multi-tile grid.
    batch2 = 1000
    x2 = jax.random.normal(k_x2, (batch2, in_features), dtype=jnp.float32)
    y2 = linear_regression_forward(x2, weight, bias)
    jax.block_until_ready(y2)
    y2_ref = x2 @ weight.T + bias
    assert y2.shape == (batch2, 1)
    assert jnp.allclose(y2, y2_ref, atol=1e-5, rtol=1e-5)

    print("KERNEL_OK")
</pallas_src>

<mosaic_0001>
module attributes {stable_mosaic.version = 11 : i64} {
  func.func @_linear_kernel(%arg0: i32, %arg1: memref<8x32xf32, #tpu.memory_space<vmem>>, %arg2: memref<32x1xf32, #tpu.memory_space<vmem>>, %arg3: memref<1xf32, #tpu.memory_space<smem>>, %arg4: memref<8x1xf32, #tpu.memory_space<vmem>>) attributes {dimension_semantics = [#tpu.dimension_semantics<parallel>], iteration_bounds = array<i64: 1>, scalar_prefetch = 0 : i64, scratch_operands = 0 : i64, tpu.core_type = #tpu.core_type<tc>, window_params = [{transform_indices = @transform_0, window_bounds = array<i64: 8, 32>}, {pipeline_mode = #tpu.pipeline_mode<synchronous>, transform_indices = @transform_1, window_bounds = array<i64: 32, 1>}, {transform_indices = @transform_2, window_bounds = array<i64: 1>}, {transform_indices = @transform_3, window_bounds = array<i64: 8, 1>}]} {
    %c0 = arith.constant 0 : index
    %c0_0 = arith.constant 0 : index
    %0 = vector.load %arg1[%c0, %c0_0] : memref<8x32xf32, #tpu.memory_space<vmem>>, vector<8x32xf32>
    %c0_1 = arith.constant 0 : index
    %c0_2 = arith.constant 0 : index
    %1 = vector.load %arg2[%c0_1, %c0_2] : memref<32x1xf32, #tpu.memory_space<vmem>>, vector<32x1xf32>
    %cst = arith.constant dense<0.000000e+00> : vector<8x1xf32>
    %2 = tpu.matmul %0, %1, %cst {dimension_numbers = #tpu.dot_dimension_numbers<[1], [0], [0], [1], [0, 0, 1, 1], [], []>} : vector<8x32xf32>, vector<32x1xf32>, vector<8x1xf32> -> vector<8x1xf32>
    %c0_3 = arith.constant 0 : index
    %3 = memref.load %arg3[%c0_3] : memref<1xf32, #tpu.memory_space<smem>>
    %4 = vector.broadcast %3 : f32 to vector<8x1xf32>
    %5 = arith.addf %2, %4 : vector<8x1xf32>
    %c0_4 = arith.constant 0 : index
    %c0_5 = arith.constant 0 : index
    %6 = vector.load %arg4[%c0_4, %c0_5] : memref<8x1xf32, #tpu.memory_space<vmem>>, vector<8x1xf32>
    tpu.vector_store %arg4[%c0_4, %c0_5], %5 {strides = array<i32>} : memref<8x1xf32, #tpu.memory_space<vmem>>, vector<8x1xf32>,
    return
  }
  func.func @transform_0(%arg0: i32) -> (i32, i32) {
    %c0_i32 = arith.constant 0 : i32
    %c0_i32_0 = arith.constant 0 : i32
    return %arg0, %c0_i32 : i32, i32
  }
  func.func @transform_1(%arg0: i32) -> (i32, i32) {
    %c0_i32 = arith.constant 0 : i32
    %c0_i32_0 = arith.constant 0 : i32
    %c0_i32_1 = arith.constant 0 : i32
    return %c0_i32, %c0_i32_0 : i32, i32
  }
  func.func @transform_2(%arg0: i32) -> i32 {
    %c0_i32 = arith.constant 0 : i32
    %c0_i32_0 = arith.constant 0 : i32
    return %c0_i32 : i32
  }
  func.func @transform_3(%arg0: i32) -> (i32, i32) {
    %c0_i32 = arith.constant 0 : i32
    %c0_i32_0 = arith.constant 0 : i32
    return %arg0, %c0_i32 : i32, i32
  }
}

</mosaic_0001>

<llo_original>
// kernel: tpu_custom_call.1
$region0: #{tpu_custom_call.1}
  #allocation0 [shape = 'u32[]', space=smem, size = 0x4, offset = 0x4, fixed_abs, tag = 'smem constant byte address 0x4 - core index']
  #allocation1 [shape = 'u32[72,128]{1,0:T(1,128)}', space=vmem, size = 0x9000, scoped, tag = 'internal scratch']
  #allocation2 [shape = 'f32[1]{0:T(128)S(6)}', space=smem, size = 0x200, scoped, tag = 'scoped memory for tpu_custom_call.1']
  %s0 = inlined_call_operand.vmem [shape: f32[8,32], index: 0, kind: input, shape index: {}]
  %s1 = inlined_call_operand.vmem [shape: f32[32,1], index: 1, kind: input, shape index: {}]
  %s2 = inlined_call_operand.<no memory space> [shape: f32[1], index: 2, kind: input, shape index: {}]
  %s3 = inlined_call_operand.vmem [shape: f32[8,1], index: 3, kind: output, shape index: {}]
  %s4 = sld [smem:[#allocation0]]
  $region22: #{tpu_custom_call.1} parent=0
    _
  %s6 = ssub.s32 1, %s4
  %s7 = scalar_select 0, %s6, %s4
  %8 = sst [smem:[#allocation2]] %s2
  // Predicated region
  $region2: #{tpu_custom_call.1} parent=0 // pred_check
    _
  $region3: #{tpu_custom_call.1} parent=0 // pred_check_branch
    %10 = sbr.rel (0) target = $region5
  $region4: #{tpu_custom_call.1} parent=0 // pred_region
    _
  $region5: #{tpu_custom_call.1} parent=0 // pred_fallthru
    _
  // Predicated region
  $region6: #{tpu_custom_call.1} parent=0 // pred_check
    _
  $region7: #{tpu_custom_call.1} parent=0 // pred_check_branch
    %12 = sbr.rel (0) target = $region9
  $region8: #{tpu_custom_call.1} parent=0 // pred_region
    _
  $region9: #{tpu_custom_call.1} parent=0 // pred_fallthru
    _
  // Predicated region
  $region10: #{tpu_custom_call.1} parent=0 // pred_check
    _
  $region11: #{tpu_custom_call.1} parent=0 // pred_check_branch
    %14 = sbr.rel (0) target = $region13
  $region12: #{tpu_custom_call.1} parent=0 // pred_region
    _
  $region13: #{tpu_custom_call.1} parent=0 // pred_fallthru
    _
  %v15 = vld [vmem:[%s0] sm:$0xff]
  %v16 = vld [vmem:[%s1] sm:$0xff]
  %v17 = vld [vmem:[%s1 + $0x8] sm:$0xff]
  %v18 = vld [vmem:[%s1 + $0x10] sm:$0xff]
  %v19 = vld [vmem:[%s1 + $0x18] sm:$0xff]
  %s20 = sld [smem:[#allocation2]]
  %v21 = vstv %s20
  %vm22 = vcmask 261120
  %v24 = vsel %vm22, %v15, 0
  %26 = vmatpush.msra.mxu0 0.0
  %27 = vmatpush.msra.mxu0 0.0
  %28 = vmatpush.msra.mxu0 0.0
  %29 = vmatpush.msra.mxu0 0.0
  %30 = vmatpush.msra.mxu0 0.0
  %31 = vmatpush.msra.mxu0 0.0
  %32 = vmatpush.msra.mxu0 0.0
  %33 = vmatpush.msra.mxu0 0.0
  %34 = vmatpush.msra.mxu0 0.0
  %35 = vmatpush.msra.mxu0 0.0
  %36 = vmatpush.msra.mxu0 0.0
  %37 = vmatpush.msra.mxu0 0.0
  %38 = vmatpush.msra.mxu0 %v19
  %39 = vmatpush.msra.mxu0 %v18
  %40 = vmatpush.msra.mxu0 %v17
  %41 = vmatpush.msra.mxu0 %v16
  %42 = vmatmul.f32.gmra.mxu0 %v24
  %v43 = vpop.f32.mrf.mxu0
  %v44 = vadd.f32 %v21, %v43
  %45 = vdwg.mxu0
  %vm46 = vcmask 7168
  %47 = vst.msk [vmem:[%s3] sm:$0xff] %vm46, %v44
  // Predicated region
  $region14: #{tpu_custom_call.1} parent=0 // pred_check
    _
  $region15: #{tpu_custom_call.1} parent=0 // pred_check_branch
    %49 = sbr.rel (0) target = $region17
  $region16: #{tpu_custom_call.1} parent=0 // pred_region
    _
  $region17: #{tpu_custom_call.1} parent=0 // pred_fallthru
    _
  // Predicated region
  $region18: #{tpu_custom_call.1} parent=0 // pred_check
    _
  $region19: #{tpu_custom_call.1} parent=0 // pred_check_branch
    %51 = sbr.rel (0) target = $region21
  $region20: #{tpu_custom_call.1} parent=0 // pred_region
    _
  $region21: #{tpu_custom_call.1} parent=0 // pred_fallthru
    _

</llo_original>
